<compile_context>
chip_gen: v7x
topology: tpu7x:2x2x1
jax: 0.10.0
libtpu: 0.0.40
codegen_flags: <defaults>
</compile_context>

<pallas_src>
import jax
import jax.numpy as jnp
from jax import lax
from jax.experimental import pallas as pl
from jax.experimental.pallas import tpu as pltpu


def make_filters(channels: int):
    """Deterministic filters matching Gradient_Loss.__init__ (for reference conv)."""
    pos = jnp.eye(channels, dtype=jnp.float32)
    neg = -pos
    # filter_x: (C_out, C_in, 1, 2), filter_x[o, i, 0, :] = (-d_oi, +d_oi)
    filter_x = jnp.stack([neg, pos], axis=-1).reshape(channels, channels, 1, 2)
    # filter_y: (C_out, C_in, 2, 1), filter_y[o, i, :, 0] = (+d_oi, -d_oi)
    filter_y = jnp.stack([pos, neg], axis=-1).reshape(channels, channels, 2, 1)
    return filter_x, filter_y


def _round_up(x: int, m: int) -> int:
    return (x + m - 1) // m * m


def gradient_loss_pallas(gen_frames: jax.Array, gt_frames: jax.Array,
                         *, target_block_bytes: int = 2 << 20) -> jax.Array:
    """Gradient L1 loss. Inputs are NCHW; any float dtype (f32 accumulation)."""
    assert gen_frames.shape == gt_frames.shape
    assert gen_frames.dtype == gt_frames.dtype
    N, C, H, W = gen_frames.shape
    planes = N * C
    HW = H * W
    count = N * C * H * W  # grad_diff_x and grad_diff_y are both (N, C, H, W)

    in_dtype = jnp.dtype(gen_frames.dtype)
    # Keep elementwise math in bf16 when the inputs are bf16 (v6e/v7x bf16 VPU);
    # everything else computes in f32.  The reduction is always f32.
    if in_dtype in (jnp.dtype(jnp.float32), jnp.dtype(jnp.bfloat16)):
        compute_dtype = in_dtype
    else:
        compute_dtype = jnp.dtype(jnp.float32)

    # Lane-dense flat layout: one plane per row, padded to a multiple of 128.
    HWp = _round_up(HW, 128)

    # --- planes per grid step, sized from RAW (useful) HBM bytes ----------
    plane_bytes = HW * in_dtype.itemsize
    TB = max(1, target_block_bytes // max(plane_bytes, 1))
    if planes >= 16:
        # Keep at least two grid steps so both v7x TensorCores get work.
        TB = min(TB, pl.cdiv(planes, 2))
    TB = min(TB, planes)
    if 8 <= TB < planes:
        # Sublane-aligned blocks when the block does not span the plane axis.
        # (When a single plane already exceeds the byte target, TB < 8 falls
        # back to the standard small-row-block pattern; the DMA is still big.)
        TB = (TB // 8) * 8
    G = pl.cdiv(planes, TB)
    planes_pad = G * TB

    gen = gen_frames.reshape(planes, HW)
    gt = gt_frames.reshape(planes, HW)
    pad_rows = planes_pad - planes
    pad_lanes = HWp - HW
    if pad_rows or pad_lanes:
        # Zero pad: pad planes/lanes contribute exactly 0 to every partial sum.
        gen = jnp.pad(gen, ((0, pad_rows), (0, pad_lanes)))
        gt = jnp.pad(gt, ((0, pad_rows), (0, pad_lanes)))

    # 0/1 boundary-mask rows (computed once here, broadcast over TB in-kernel):
    #   mask_x == 0 where the "w+1" neighbour is the zero pad (w == W-1) or the
    #   lane is flat-axis padding; mask_y == 0 where the "h+1" neighbour is the
    #   zero pad (h == H-1), which also covers all flat-axis padding lanes.
    idx = jnp.arange(HWp, dtype=jnp.int32)
    mask_x = (((idx % W) != (W - 1)) & (idx < HW)).astype(compute_dtype).reshape(1, HWp)
    mask_y = (idx < (H - 1) * W).astype(compute_dtype).reshape(1, HWp)

    def kernel(mx_ref, my_ref, gen_ref, gt_ref, out_ref):
        g = gen_ref[...]            # (TB, HWp), native dtype straight off the DMA
        t = gt_ref[...]
        if g.dtype != compute_dtype:
            g = g.astype(compute_dtype)
            t = t.astype(compute_dtype)
        mx = mx_ref[...]            # (1, HWp) 0/1 rows, broadcast over TB planes
        my = my_ref[...]

        # Neighbour at w+1 (roll by -1 == HWp-1) / h+1 (roll by -W == HWp-W),
        # with the wrapped/boundary positions forced to the zero-pad value.
        g_r = pltpu.roll(g, HWp - 1, axis=1) * mx
        t_r = pltpu.roll(t, HWp - 1, axis=1) * mx
        g_d = pltpu.roll(g, HWp - W, axis=1) * my
        t_d = pltpu.roll(t, HWp - W, axis=1) * my

        # |  |gt_dx| - |gen_dx| | + |  |gt_dy| - |gen_dy| |, fully fused.
        integrand = (jnp.abs(jnp.abs(t_r - t) - jnp.abs(g_r - g))
                     + jnp.abs(jnp.abs(t - t_d) - jnp.abs(g - g_d)))

        # Sublane-only partial reduce with f32 accumulation; the single cheap
        # cross-lane reduce happens once in the wrapper.
        psum = jnp.sum(integrand.astype(jnp.float32), axis=0, keepdims=True)
        out_ref[...] = psum.reshape(1, 1, HWp)

    in_bytes = 2 * count * in_dtype.itemsize
    out_bytes = G * HWp * 4
    mask_bytes = 2 * HWp * jnp.dtype(compute_dtype).itemsize
    cost = pl.CostEstimate(flops=14 * count, transcendentals=0,
                           bytes_accessed=in_bytes + out_bytes + mask_bytes)

    partials = pl.pallas_call(
        kernel,
        out_shape=jax.ShapeDtypeStruct((G, 1, HWp), jnp.float32),
        grid_spec=pltpu.PrefetchScalarGridSpec(
            num_scalar_prefetch=0,
            grid=(G,),
            in_specs=[
                pl.BlockSpec((1, HWp), lambda i: (0, 0)),    # mask_x (fetched once)
                pl.BlockSpec((1, HWp), lambda i: (0, 0)),    # mask_y (fetched once)
                pl.BlockSpec((TB, HWp), lambda i: (i, 0)),   # gen planes
                pl.BlockSpec((TB, HWp), lambda i: (i, 0)),   # gt planes
            ],
            out_specs=pl.BlockSpec((1, 1, HWp), lambda i: (i, 0, 0)),
        ),
        compiler_params=pltpu.CompilerParams(
            dimension_semantics=("parallel",),
            vmem_limit_bytes=48 * 1024 * 1024,
        ),
        cost_estimate=cost,
    )(mask_x, mask_y, gen, gt)

    # Tiny final cross-lane reduction + mean in the wrapper.
    return jnp.sum(partials) / jnp.float32(count)


def gradient_loss_reference(gen_frames, gt_frames, filter_x, filter_y):
    """Pure-JAX reference that mirrors the PyTorch forward exactly (conv-based)."""
    dn = ("NCHW", "OIHW", "NCHW")
    pad_x = ((0, 0), (0, 0), (0, 0), (0, 1))   # F.pad(x, [0,1,0,0]): right pad width
    pad_y = ((0, 0), (0, 0), (0, 1), (0, 0))   # F.pad(x, [0,0,0,1]): bottom pad height

    def conv(x, w):
        return lax.conv_general_dilated(x, w, (1, 1), "VALID", dimension_numbers=dn)

    gen_dx = jnp.abs(conv(jnp.pad(gen_frames, pad_x), filter_x))
    gen_dy = jnp.abs(conv(jnp.pad(gen_frames, pad_y), filter_y))
    gt_dx = jnp.abs(conv(jnp.pad(gt_frames, pad_x), filter_x))
    gt_dy = jnp.abs(conv(jnp.pad(gt_frames, pad_y), filter_y))
    return jnp.mean(jnp.abs(gt_dx - gen_dx) + jnp.abs(gt_dy - gen_dy))


if __name__ == "__main__":
    key = jax.random.PRNGKey(0)

    # Spec shape: batch=2, channels=4, spatial=16x16 (H*W = 256: lane-dense, no pad).
    N, C, H, W = 2, 4, 16, 16
    k1, k2 = jax.random.split(key)
    gen_frames = jax.random.normal(k1, (N, C, H, W), dtype=jnp.float32)
    gt_frames = jax.random.normal(k2, (N, C, H, W), dtype=jnp.float32)

    loss = gradient_loss_pallas(gen_frames, gt_frames)
    jax.block_until_ready(loss)

    fx, fy = make_filters(C)
    ref = gradient_loss_reference(gen_frames, gt_frames, fx, fy)
    assert jnp.allclose(loss, ref, rtol=1e-4, atol=1e-5), (loss, ref)

    # Odd spatial shape: exercises the flat-axis zero-padding (H*W -> 128) and
    # the boundary-mask path.
    N2, C2, H2, W2 = 2, 3, 5, 7
    k3, k4 = jax.random.split(k2)
    gen2 = jax.random.normal(k3, (N2, C2, H2, W2), dtype=jnp.float32)
    gt2 = jax.random.normal(k4, (N2, C2, H2, W2), dtype=jnp.float32)
    loss2 = gradient_loss_pallas(gen2, gt2)
    jax.block_until_ready(loss2)
    fx2, fy2 = make_filters(C2)
    ref2 = gradient_loss_reference(gen2, gt2, fx2, fy2)
    assert jnp.allclose(loss2, ref2, rtol=1e-4, atol=1e-5), (loss2, ref2)

    print("KERNEL_OK")
</pallas_src>

<mosaic_0001>
module attributes {stable_mosaic.version = 11 : i64} {
  func.func @kernel(%arg0: i32, %arg1: memref<1x256xf32, #tpu.memory_space<vmem>>, %arg2: memref<1x256xf32, #tpu.memory_space<vmem>>, %arg3: memref<8x256xf32, #tpu.memory_space<vmem>>, %arg4: memref<8x256xf32, #tpu.memory_space<vmem>>, %arg5: memref<1x1x256xf32, #tpu.memory_space<vmem>>) attributes {dimension_semantics = [#tpu.dimension_semantics<parallel>], iteration_bounds = array<i64: 1>, scalar_prefetch = 0 : i64, scratch_operands = 0 : i64, tpu.core_type = #tpu.core_type<tc>, window_params = [{pipeline_mode = #tpu.pipeline_mode<synchronous>, transform_indices = @transform_0, window_bounds = array<i64: 1, 256>}, {pipeline_mode = #tpu.pipeline_mode<synchronous>, transform_indices = @transform_1, window_bounds = array<i64: 1, 256>}, {transform_indices = @transform_2, window_bounds = array<i64: 8, 256>}, {transform_indices = @transform_3, window_bounds = array<i64: 8, 256>}, {transform_indices = @transform_4, window_bounds = array<i64: 1, 1, 256>}]} {
    %c0 = arith.constant 0 : index
    %c0_0 = arith.constant 0 : index
    %0 = vector.load %arg3[%c0, %c0_0] : memref<8x256xf32, #tpu.memory_space<vmem>>, vector<8x256xf32>
    %c0_1 = arith.constant 0 : index
    %c0_2 = arith.constant 0 : index
    %1 = vector.load %arg4[%c0_1, %c0_2] : memref<8x256xf32, #tpu.memory_space<vmem>>, vector<8x256xf32>
    %c0_3 = arith.constant 0 : index
    %c0_4 = arith.constant 0 : index
    %2 = vector.load %arg1[%c0_3, %c0_4] : memref<1x256xf32, #tpu.memory_space<vmem>>, vector<1x256xf32>
    %c0_5 = arith.constant 0 : index
    %c0_6 = arith.constant 0 : index
    %3 = vector.load %arg2[%c0_5, %c0_6] : memref<1x256xf32, #tpu.memory_space<vmem>>, vector<1x256xf32>
    %c255_i32 = arith.constant 255 : i32
    %4 = tpu.dynamic_rotate %0 by %c255_i32 dim 1 : vector<8x256xf32>, i32 -> vector<8x256xf32>
    %5 = vector.broadcast %2 : vector<1x256xf32> to vector<8x256xf32>
    %6 = arith.mulf %4, %5 : vector<8x256xf32>
    %c255_i32_7 = arith.constant 255 : i32
    %7 = tpu.dynamic_rotate %1 by %c255_i32_7 dim 1 : vector<8x256xf32>, i32 -> vector<8x256xf32>
    %8 = vector.broadcast %2 : vector<1x256xf32> to vector<8x256xf32>
    %9 = arith.mulf %7, %8 : vector<8x256xf32>
    %c240_i32 = arith.constant 240 : i32
    %10 = tpu.dynamic_rotate %0 by %c240_i32 dim 1 : vector<8x256xf32>, i32 -> vector<8x256xf32>
    %11 = vector.broadcast %3 : vector<1x256xf32> to vector<8x256xf32>
    %12 = arith.mulf %10, %11 : vector<8x256xf32>
    %c240_i32_8 = arith.constant 240 : i32
    %13 = tpu.dynamic_rotate %1 by %c240_i32_8 dim 1 : vector<8x256xf32>, i32 -> vector<8x256xf32>
    %14 = vector.broadcast %3 : vector<1x256xf32> to vector<8x256xf32>
    %15 = arith.mulf %13, %14 : vector<8x256xf32>
    %16 = arith.subf %9, %1 : vector<8x256xf32>
    %17 = math.absf %16 : vector<8x256xf32>
    %18 = arith.subf %6, %0 : vector<8x256xf32>
    %19 = math.absf %18 : vector<8x256xf32>
    %20 = arith.subf %17, %19 : vector<8x256xf32>
    %21 = math.absf %20 : vector<8x256xf32>
    %22 = arith.subf %1, %15 : vector<8x256xf32>
    %23 = math.absf %22 : vector<8x256xf32>
    %24 = arith.subf %0, %12 : vector<8x256xf32>
    %25 = math.absf %24 : vector<8x256xf32>
    %26 = arith.subf %23, %25 : vector<8x256xf32>
    %27 = math.absf %26 : vector<8x256xf32>
    %28 = arith.addf %21, %27 : vector<8x256xf32>
    %cst = arith.constant dense<0.000000e+00> : vector<256xf32>
    %29 = vector.multi_reduction <add>, %28, %cst [0] : vector<8x256xf32> to vector<256xf32>
    %30 = vector.shape_cast %29 : vector<256xf32> to vector<1x256xf32>
    %31 = vector.shape_cast %30 : vector<1x256xf32> to vector<1x1x256xf32>
    %c0_9 = arith.constant 0 : index
    %c0_10 = arith.constant 0 : index
    %c0_11 = arith.constant 0 : index
    %32 = vector.load %arg5[%c0_9, %c0_10, %c0_11] : memref<1x1x256xf32, #tpu.memory_space<vmem>>, vector<1x1x256xf32>
    tpu.vector_store %arg5[%c0_9, %c0_10, %c0_11], %31 {strides = array<i32>} : memref<1x1x256xf32, #tpu.memory_space<vmem>>, vector<1x1x256xf32>,
    return
  }
  func.func @transform_0(%arg0: i32) -> (i32, i32) {
    %c0_i32 = arith.constant 0 : i32
    %c0_i32_0 = arith.constant 0 : i32
    %c0_i32_1 = arith.constant 0 : i32
    return %c0_i32, %c0_i32_0 : i32, i32
  }
  func.func @transform_1(%arg0: i32) -> (i32, i32) {
    %c0_i32 = arith.constant 0 : i32
    %c0_i32_0 = arith.constant 0 : i32
    %c0_i32_1 = arith.constant 0 : i32
    return %c0_i32, %c0_i32_0 : i32, i32
  }
  func.func @transform_2(%arg0: i32) -> (i32, i32) {
    %c0_i32 = arith.constant 0 : i32
    %c0_i32_0 = arith.constant 0 : i32
    return %arg0, %c0_i32 : i32, i32
  }
  func.func @transform_3(%arg0: i32) -> (i32, i32) {
    %c0_i32 = arith.constant 0 : i32
    %c0_i32_0 = arith.constant 0 : i32
    return %arg0, %c0_i32 : i32, i32
  }
  func.func @transform_4(%arg0: i32) -> (i32, i32, i32) {
    %c0_i32 = arith.constant 0 : i32
    %c0_i32_0 = arith.constant 0 : i32
    %c0_i32_1 = arith.constant 0 : i32
    return %arg0, %c0_i32, %c0_i32_0 : i32, i32, i32
  }
}

</mosaic_0001>

<llo_original>
// kernel: tpu_custom_call.1
$region0: #{tpu_custom_call.1}
  #allocation0 [shape = 'u32[]', space=smem, size = 0x4, offset = 0x4, fixed_abs, tag = 'smem constant byte address 0x4 - core index']
  #allocation1 [shape = 'u32[144,128]{1,0:T(1,128)}', space=vmem, size = 0x12000, scoped, tag = 'internal scratch']
  %s0 = inlined_call_operand.hbm [shape: f32[1,256], index: 0, kind: input, shape index: {}]
  %s1 = inlined_call_operand.vmem [shape: f32[1,256], index: 1, kind: input, shape index: {}]
  %s2 = inlined_call_operand.hbm [shape: f32[8,256], index: 2, kind: input, shape index: {}]
  %s3 = inlined_call_operand.hbm [shape: f32[8,256], index: 3, kind: input, shape index: {}]
  %s4 = inlined_call_operand.hbm [shape: f32[1,1,256], index: 4, kind: output, shape index: {}]
  %s5 = sld [smem:[#allocation0]]
  $region38: #{tpu_custom_call.1} parent=0
    _
  %s7 = ssub.s32 1, %s5
  %s8 = scalar_select 0, %s7, %s5
  $region1: #{tpu_custom_call.1} parent=0
    #allocation2 [shape = 'u8[1024]{0}', space=vmem, size = 0x400, scoped, tag = 'input window, operand 0, single buffered']
    #allocation3 [shape = 's32[1]{0}', space=sflag, size = 0x4, scoped, tag = 'scoped memory for tpu_custom_call.1']
    #allocation4 [shape = 's32[1]{0}', space=sflag, size = 0x4, scoped, tag = 'scoped memory for tpu_custom_call.1']
    #allocation5 [shape = 'u8[8192]{0}', space=vmem, size = 0x2000, scoped, tag = 'input window, operand 2, single buffered']
    #allocation6 [shape = 's32[1]{0}', space=sflag, size = 0x4, scoped, tag = 'scoped memory for tpu_custom_call.1']
    #allocation7 [shape = 'u8[8192]{0}', space=vmem, size = 0x2000, scoped, tag = 'input window, operand 3, single buffered']
    #allocation8 [shape = 'u8[1024]{0}', space=vmem, size = 0x400, scoped, tag = 'output window, operand 0, single buffered']
    %9 = vsyncpa [#allocation3], 0
    %10 = vsyncpa [#allocation6], 0
    %11 = vsyncpa [#allocation4], 0
    // Predicated region
    $region2: #{tpu_custom_call.1} parent=1 // pred_check
      _
    $region3: #{tpu_custom_call.1} parent=1 // pred_check_branch
      %13 = sbr.rel (0) target = $region5
    $region4: #{tpu_custom_call.1} parent=1 // pred_region
      %s15 = ssub.s32 32, 32
      %16 = vsyncadd [#allocation3], %s15
      %s18 = sshll.u32 [#allocation2], 4
      %s19 = int_to_ptr.vmem [resolvable:$true] %s18
      %21 = dma.hbm_to_vmem [thread:$0]  %s0, 32, %s19, [#allocation3]
    $region5: #{tpu_custom_call.1} parent=1 // pred_fallthru
      _
    // Predicated region
    $region6: #{tpu_custom_call.1} parent=1 // pred_check
      _
    $region7: #{tpu_custom_call.1} parent=1 // pred_check_branch
      %23 = sbr.rel (0) target = $region9
    $region8: #{tpu_custom_call.1} parent=1 // pred_region
      _
    $region9: #{tpu_custom_call.1} parent=1 // pred_fallthru
      _
    // Predicated region
    $region10: #{tpu_custom_call.1} parent=1 // pred_check
      _
    $region11: #{tpu_custom_call.1} parent=1 // pred_check_branch
      %25 = sbr.rel (0) target = $region13
    $region12: #{tpu_custom_call.1} parent=1 // pred_region
      %s27 = ssub.s32 256, 256
      %28 = vsyncadd [#allocation6], %s27
      %s30 = sshll.u32 [#allocation5], 4
      %s31 = int_to_ptr.vmem [resolvable:$true] %s30
      %33 = dma.hbm_to_vmem [thread:$0]  %s2, 256, %s31, [#allocation6]
    $region13: #{tpu_custom_call.1} parent=1 // pred_fallthru
      _
    // Predicated region
    $region14: #{tpu_custom_call.1} parent=1 // pred_check
      _
    $region15: #{tpu_custom_call.1} parent=1 // pred_check_branch
      %35 = sbr.rel (0) target = $region17
    $region16: #{tpu_custom_call.1} parent=1 // pred_region
      %s37 = ssub.s32 256, 256
      %38 = vsyncadd [#allocation6], %s37
      %s40 = sshll.u32 [#allocation7], 4
      %s41 = int_to_ptr.vmem [resolvable:$true] %s40
      %43 = dma.hbm_to_vmem [thread:$0]  %s3, 256, %s41, [#allocation6]
    $region17: #{tpu_custom_call.1} parent=1 // pred_fallthru
      _
    // Predicated region
    $region18: #{tpu_custom_call.1} parent=1 // pred_check
      _
    $region19: #{tpu_custom_call.1} parent=1 // pred_check_branch
      %45 = sbr.rel (0) target = $region21
    $region20: #{tpu_custom_call.1} parent=1 // pred_region
      %46 = dma.done [#allocation3], 32
    $region21: #{tpu_custom_call.1} parent=1 // pred_fallthru
      _
    // Predicated region
    $region22: #{tpu_custom_call.1} parent=1 // pred_check
      _
    $region23: #{tpu_custom_call.1} parent=1 // pred_check_branch
      %48 = sbr.rel (0) target = $region25
    $region24: #{tpu_custom_call.1} parent=1 // pred_region
      %49 = dma.done [#allocation6], 256
    $region25: #{tpu_custom_call.1} parent=1 // pred_fallthru
      _
    // Predicated region
    $region26: #{tpu_custom_call.1} parent=1 // pred_check
      _
    $region27: #{tpu_custom_call.1} parent=1 // pred_check_branch
      %51 = sbr.rel (0) target = $region29
    $region28: #{tpu_custom_call.1} parent=1 // pred_region
      %52 = dma.done [#allocation6], 256
    $region29: #{tpu_custom_call.1} parent=1 // pred_fallthru
      _
    %v53 = vld [vmem:[#allocation5] sm:$0xff]
    %v54 = vld [vmem:[#allocation5 + $0x8] sm:$0xff]
    %v55 = vld [vmem:[#allocation7] sm:$0xff]
    %v56 = vld [vmem:[#allocation7 + $0x8] sm:$0xff]
    %v57 = vld [vmem:[#allocation2] sm:$0x3]
    %v58 = vld [vmem:[%s1] sm:$0x3]
    %59 = vrot.lane.b32.xlu0 %v53, 127
    %v60 = vpop.permute.xlu0 %59
    %61 = vrot.lane.b32.xlu0 %v54, 127
    %v62 = vpop.permute.xlu0 %61
    %v63 = vlaneseq
    %v64 = vand.u32 %v63, 127
    %vm65 = vcmp.lt.s32.totalorder %v64, 127
    %v66 = vsel %vm65, %v60, %v62
    %v67 = vsel %vm65, %v62, %v60
    %v69 = vlaneseq
    %v70 = vshrl.u32 %v69, 7
    %v71 = vsub.s32 0, %v70
    %v72 = vrot.slane %v57, %v71
    %v73 = vlaneseq
    %v74 = vshrl.u32 %v73, 7
    %v75 = vsub.s32 1, %v74
    %v76 = vrot.slane %v57, %v75
    %v79 = vmul.f32 %v66, %v72
    %v80 = vmul.f32 %v67, %v76
    %81 = vrot.lane.b32.xlu0 %v55, 127
    %v82 = vpop.permute.xlu0 %81
    %83 = vrot.lane.b32.xlu0 %v56, 127
    %v84 = vpop.permute.xlu0 %83
    %v85 = vsel %vm65, %v82, %v84
    %v86 = vsel %vm65, %v84, %v82
    %v87 = vmul.f32 %v85, %v72
    %v88 = vmul.f32 %v86, %v76
    %89 = vrot.lane.b32.xlu0 %v53, 112
    %v90 = vpop.permute.xlu0 %89
    %91 = vrot.lane.b32.xlu0 %v54, 112
    %v92 = vpop.permute.xlu0 %91
    %vm93 = vcmp.lt.s32.totalorder %v64, 112
    %v94 = vsel %vm93, %v90, %v92
    %v95 = vsel %vm93, %v92, %v90
    %v97 = vlaneseq
    %v98 = vshrl.u32 %v97, 7
    %v99 = vsub.s32 0, %v98
    %v100 = vrot.slane %v58, %v99
    %v101 = vlaneseq
    %v102 = vshrl.u32 %v101, 7
    %v103 = vsub.s32 1, %v102
    %v104 = vrot.slane %v58, %v103
    %v107 = vmul.f32 %v94, %v100
    %v108 = vmul.f32 %v95, %v104
    %109 = vrot.lane.b32.xlu0 %v55, 112
    %v110 = vpop.permute.xlu0 %109
    %111 = vrot.lane.b32.xlu0 %v56, 112
    %v112 = vpop.permute.xlu0 %111
    %v113 = vsel %vm93, %v110, %v112
    %v114 = vsel %vm93, %v112, %v110
    %v115 = vmul.f32 %v113, %v100
    %v116 = vmul.f32 %v114, %v104
    %v117 = vsub.f32 %v87, %v55
    %v118 = vsub.f32 %v88, %v56
    %v119 = vand.u32 2147483647, %v117
    %v120 = vand.u32 2147483647, %v118
    %v121 = vsub.f32 %v79, %v53
    %v122 = vsub.f32 %v80, %v54
    %v123 = vand.u32 2147483647, %v121
    %v124 = vand.u32 2147483647, %v122
    %v125 = vsub.f32 %v119, %v123
    %v126 = vsub.f32 %v120, %v124
    %v127 = vand.u32 2147483647, %v125
    %v128 = vand.u32 2147483647, %v126
    %v129 = vsub.f32 %v55, %v115
    %v130 = vsub.f32 %v56, %v116
    %v131 = vand.u32 2147483647, %v129
    %v132 = vand.u32 2147483647, %v130
    %v133 = vsub.f32 %v53, %v107
    %v134 = vsub.f32 %v54, %v108
    %v135 = vand.u32 2147483647, %v133
    %v136 = vand.u32 2147483647, %v134
    %v137 = vsub.f32 %v131, %v135
    %v138 = vsub.f32 %v132, %v136
    %v139 = vand.u32 2147483647, %v137
    %v140 = vand.u32 2147483647, %v138
    %v141 = vadd.f32 %v127, %v139
    %v142 = vadd.f32 %v128, %v140
    %v143 = vrot.slane %v141, 4
    %v144 = vadd.f32 %v141, %v143
    %v145 = vrot.slane %v144, 2
    %v146 = vadd.f32 %v144, %v145
    %v147 = vrot.slane %v146, 1
    %v148 = vadd.f32 %v146, %v147
    %v149 = vrot.slane %v142, 4
    %v150 = vadd.f32 %v142, %v149
    %v151 = vrot.slane %v150, 2
    %v152 = vadd.f32 %v150, %v151
    %v153 = vrot.slane %v152, 1
    %v154 = vadd.f32 %v152, %v153
    %v157 = vcombine.low %v148, %v154
    %v159 = vunpack.c.l.s4 1966171168
    %v160 = vunpack.c.0.s8 %v159
    %v161 = vlaneseq
    %v162 = vshrl.u32 %v161, 7
    %v163 = vsub.s32 %v160, %v162
    %v164 = vrot.slane %v157, %v163
    %v166 = vunpack.c.l.s4 1966171168
    %v167 = vunpack.c.0.s8 %v166
    %v168 = vlaneseq
    %v169 = vshrl.u32 %v168, 7
    %v170 = vsub.s32 %v167, %v169
    %v171 = vrot.slane %v164, %v170
    %v173 = vlaneseq
    %vm174 = vcmp.ge.s32.totalorder %v173, 0
    %vm175 = vcmp.lt.s32.totalorder %v173, 256
    %vm176 = vmand %vm174, %vm175
    %177 = vst.msk [vmem:[#allocation8] sm:$0x3] %vm176, %v171
    // Predicated region
    $region30: #{tpu_custom_call.1} parent=1 // pred_check
      _
    $region31: #{tpu_custom_call.1} parent=1 // pred_check_branch
      %179 = sbr.rel (0) target = $region33
    $region32: #{tpu_custom_call.1} parent=1 // pred_region
      %s181 = ssub.s32 32, 32
      %182 = vsyncadd [#allocation4], %s181
      %s184 = sshll.u32 [#allocation8], 4
      %s185 = int_to_ptr.vmem [resolvable:$true] %s184
      %187 = dma.vmem_to_hbm [thread:$0]  %s185, 32, %s4, [#allocation4]
    $region33: #{tpu_custom_call.1} parent=1 // pred_fallthru
      _
    // Predicated region
    $region34: #{tpu_custom_call.1} parent=1 // pred_check
      _
    $region35: #{tpu_custom_call.1} parent=1 // pred_check_branch
      %189 = sbr.rel (0) target = $region37
    $region36: #{tpu_custom_call.1} parent=1 // pred_region
      %190 = dma.done [#allocation4], 32
    $region37: #{tpu_custom_call.1} parent=1 // pred_fallthru
      _
    %191 = vsyncpa [#allocation3], 1
    %192 = vsyncpa [#allocation6], 1
    %193 = vsyncpa [#allocation4], 1

</llo_original>
